<compile_context>
chip_gen: v5e
topology: v5e:2x2
jax: 0.10.0
libtpu: 0.0.40
codegen_flags: <defaults>
</compile_context>

<pallas_src>
import functools

import jax
import jax.numpy as jnp
from jax.experimental import pallas as pl
from jax.experimental.pallas import tpu as pltpu

LANE = 512                             # lane-dense slab width (multiple of 128)
TARGET_BLOCK_BYTES = 4 * 1024 * 1024   # ~4 MiB per block (per the v6e/v7x sweep)
VMEM_LIMIT_BYTES = 32 * 1024 * 1024    # fits 2x(in)+2x(out) 4 MiB buffers on all gens


# ----------------------------------------------------------------------------
# Shared math: fused clamp(0,1) + uniform quantization (f32 compute)
# ----------------------------------------------------------------------------
def _quant_math(x, a_bit):
    x = x.astype(jnp.float32)
    if a_bit == 1:
        # sign(clamp(x,0,1)) == 1 for x > 0 else 0 -> one compare + convert.
        return (x > 0.0).astype(jnp.float32)
    n = float(2 ** a_bit - 1)
    inv_n = 1.0 / n  # multiply instead of vector divide (<= 1 ulp difference)
    return jnp.round(jnp.clip(x, 0.0, 1.0) * n) * inv_n


# ----------------------------------------------------------------------------
# Kernel: elementwise quantize of one (block_rows, LANE) tile
# ----------------------------------------------------------------------------
def _quant_kernel(x_ref, o_ref, *, a_bit):
    o_ref[...] = _quant_math(x_ref[...], a_bit).astype(o_ref.dtype)


# ----------------------------------------------------------------------------
# Wrapper
# ----------------------------------------------------------------------------
@functools.partial(jax.jit, static_argnames=("a_bit",))
def activation_quantize(x, a_bit):
    assert a_bit <= 8 or a_bit == 32
    if a_bit == 32:
        return x  # identity path: no kernel launch

    orig_shape = x.shape
    orig_dtype = x.dtype
    itemsize = jnp.dtype(orig_dtype).itemsize

    flat = x.reshape(-1)
    n_elems = flat.shape[0]
    n_bulk = (n_elems // LANE) * LANE   # 512-aligned bulk handled by the kernel
    n_tail = n_elems - n_bulk           # < 512 ragged tail handled by plain jnp
    rows = n_bulk // LANE

    pieces = []

    if rows > 0:
        # Dtype-aware block rows targeting ~4 MiB per block, multiple of 8.
        cap_rows = max(8, (TARGET_BLOCK_BYTES // (LANE * itemsize)) // 8 * 8)
        # If the whole slab is smaller than one block, use the full extent
        # (block dims equal to array dims are always legal). Otherwise the
        # block is (8,128)-divisible and Pallas masks the partial last block.
        block_rows = rows if rows < cap_rows else cap_rows
        grid = pl.cdiv(rows, block_rows)

        bulk = flat if n_tail == 0 else flat[:n_bulk]
        x2d = bulk.reshape(rows, LANE)  # contiguous reshape: layout bitcast

        out2d = pl.pallas_call(
            functools.partial(_quant_kernel, a_bit=a_bit),
            out_shape=jax.ShapeDtypeStruct((rows, LANE), orig_dtype),
            grid=(grid,),
            in_specs=[pl.BlockSpec((block_rows, LANE), lambda i: (i, 0))],
            out_specs=pl.BlockSpec((block_rows, LANE), lambda i: (i, 0)),
            compiler_params=pltpu.CompilerParams(
                dimension_semantics=("parallel",),
                vmem_limit_bytes=VMEM_LIMIT_BYTES),
            cost_estimate=pl.CostEstimate(
                flops=5 * n_bulk,
                transcendentals=0,
                bytes_accessed=2 * n_bulk * itemsize),
        )(x2d)
        pieces.append(out2d.reshape(-1))

    if n_tail > 0:
        # Tiny (<512 elem) tail: fused XLA elementwise, avoids a full-array
        # pad + slice (each of which would be an extra whole HBM pass).
        pieces.append(_quant_math(flat[n_bulk:], a_bit).astype(orig_dtype))

    out_flat = pieces[0] if len(pieces) == 1 else jnp.concatenate(pieces)
    return out_flat.reshape(orig_shape)


# ----------------------------------------------------------------------------
# Pure-JAX reference (mirrors the PyTorch forward) for a sanity check
# ----------------------------------------------------------------------------
def _reference(x, a_bit):
    if a_bit == 32:
        return x
    xc = jnp.clip(x.astype(jnp.float32), 0.0, 1.0)
    if a_bit == 1:
        return jnp.sign(xc).astype(x.dtype)
    n = float(2 ** a_bit - 1)
    return (jnp.round(xc * n) / n).astype(x.dtype)


if __name__ == "__main__":
    key = jax.random.PRNGKey(0)
    k1, k2 = jax.random.split(key)
    # NCHW-style activation tensors; values span outside [0,1] to exercise clamp.
    x_aligned = jax.random.normal(k1, (2, 4, 16, 16), dtype=jnp.float32) * 1.5  # 2048 = 4*512
    x_ragged = jax.random.normal(k2, (2, 3, 7, 13), dtype=jnp.float32) * 1.5    # 546 = 512 + 34

    for x in (x_aligned, x_ragged):
        for a_bit in (1, 2, 4, 8, 32):
            out = jax.block_until_ready(activation_quantize(x, a_bit))
            ref = _reference(x, a_bit)
            assert out.shape == x.shape and out.dtype == x.dtype
            # atol covers the <=1 ulp difference of the reciprocal multiply.
            assert jnp.allclose(out, ref, atol=1e-6, rtol=0.0), (
                f"mismatch vs reference for a_bit={a_bit}, shape={x.shape}")

    print("KERNEL_OK")
</pallas_src>

<mosaic_0001>
module attributes {stable_mosaic.version = 11 : i64} {
  func.func @_quant_kernel(%arg0: i32, %arg1: memref<4x512xf32, #tpu.memory_space<vmem>>, %arg2: memref<4x512xf32, #tpu.memory_space<vmem>>) attributes {dimension_semantics = [#tpu.dimension_semantics<parallel>], iteration_bounds = array<i64: 1>, scalar_prefetch = 0 : i64, scratch_operands = 0 : i64, tpu.core_type = #tpu.core_type<tc>, window_params = [{transform_indices = @transform_0, window_bounds = array<i64: 4, 512>}, {transform_indices = @transform_1, window_bounds = array<i64: 4, 512>}]} {
    %c0 = arith.constant 0 : index
    %c0_0 = arith.constant 0 : index
    %0 = vector.load %arg1[%c0, %c0_0] : memref<4x512xf32, #tpu.memory_space<vmem>>, vector<4x512xf32>
    %cst = arith.constant 0.000000e+00 : f32
    %1 = vector.broadcast %cst : f32 to vector<4x512xf32>
    %2 = arith.cmpf ogt, %0, %1 : vector<4x512xf32>
    %3 = arith.extui %2 : vector<4x512xi1> to vector<4x512xi32>
    %4 = arith.sitofp %3 : vector<4x512xi32> to vector<4x512xf32>
    %c0_1 = arith.constant 0 : index
    %c0_2 = arith.constant 0 : index
    %5 = vector.load %arg2[%c0_1, %c0_2] : memref<4x512xf32, #tpu.memory_space<vmem>>, vector<4x512xf32>
    tpu.vector_store %arg2[%c0_1, %c0_2], %4 {strides = array<i32>} : memref<4x512xf32, #tpu.memory_space<vmem>>, vector<4x512xf32>,
    return
  }
  func.func @transform_0(%arg0: i32) -> (i32, i32) {
    %c0_i32 = arith.constant 0 : i32
    %c0_i32_0 = arith.constant 0 : i32
    return %arg0, %c0_i32 : i32, i32
  }
  func.func @transform_1(%arg0: i32) -> (i32, i32) {
    %c0_i32 = arith.constant 0 : i32
    %c0_i32_0 = arith.constant 0 : i32
    return %arg0, %c0_i32 : i32, i32
  }
}

</mosaic_0001>

<llo_original>
// kernel: activation_quantize.1
$region0: #{activation_quantize.1}
  #allocation0 [shape = 'u32[]', space=smem, size = 0x4, offset = 0x4, fixed_abs, tag = 'smem constant byte address 0x4 - core index']
  #allocation1 [shape = 'u32[72,128]{1,0:T(1,128)}', space=vmem, size = 0x9000, scoped, tag = 'internal scratch']
  %s0 = inlined_call_operand.vmem [shape: f32[4,512], index: 0, kind: input, shape index: {}]
  %s1 = inlined_call_operand.vmem [shape: f32[4,512], index: 1, kind: output, shape index: {}]
  %s2 = sld [smem:[#allocation0]]
  $region14: #{activation_quantize.1} parent=0
    _
  %s4 = ssub.s32 1, %s2
  %s5 = scalar_select 0, %s4, %s2
  // Predicated region
  $region2: #{activation_quantize.1} parent=0 // pred_check
    _
  $region3: #{activation_quantize.1} parent=0 // pred_check_branch
    %7 = sbr.rel (0) target = $region5
  $region4: #{activation_quantize.1} parent=0 // pred_region
    _
  $region5: #{activation_quantize.1} parent=0 // pred_fallthru
    _
  %v8 = vld [vmem:[%s0] sm:$0xff]
  %v9 = vld [vmem:[%s0 + $0x8] sm:$0xff]
  %vm10 = vcmp.gt.f32.partialorder %v8, 0.0
  %vm11 = vcmp.gt.f32.partialorder %v9, 0.0
  %v12 = vsel %vm10, 1, 0
  %v13 = vsel %vm11, 1, 0
  %v14 = vcvt.s32.f32 %v12
  %v15 = vcvt.s32.f32 %v13
  %16 = vst [vmem:[%s1] sm:$0xff] %v14
  %17 = vst [vmem:[%s1 + $0x8] sm:$0xff] %v15
  // Predicated region
  $region6: #{activation_quantize.1} parent=0 // pred_check
    _
  $region7: #{activation_quantize.1} parent=0 // pred_check_branch
    %19 = sbr.rel (0) target = $region9
  $region8: #{activation_quantize.1} parent=0 // pred_region
    _
  $region9: #{activation_quantize.1} parent=0 // pred_fallthru
    _
  // Predicated region
  $region10: #{activation_quantize.1} parent=0 // pred_check
    _
  $region11: #{activation_quantize.1} parent=0 // pred_check_branch
    %21 = sbr.rel (0) target = $region13
  $region12: #{activation_quantize.1} parent=0 // pred_region
    _
  $region13: #{activation_quantize.1} parent=0 // pred_fallthru
    _

</llo_original>
